<compile_context>
chip_gen: v7x
topology: tpu7x:2x2x1
jax: 0.10.0
libtpu: 0.0.40
codegen_flags: <defaults>
</compile_context>

<pallas_src>
import functools
import math

import jax
import jax.numpy as jnp
from jax.experimental import pallas as pl
from jax.experimental.pallas import tpu as pltpu

ACT_DT = jnp.bfloat16          # activation dtype carried between kernels
_TM, _TN, _TK = 512, 512, 1024  # default linear tiles (v5e/v6e/v7x friendly)
NEG = -1e9


def _round_up(x, m):
    return ((x + m - 1) // m) * m


def _pick_tile(dim, maxt, unit):
    """Largest tile <= maxt that exactly divides `dim` (multiple of `unit`), else `dim`."""
    if dim <= maxt:
        return dim
    t = (maxt // unit) * unit
    while t >= unit:
        if dim % t == 0:
            return t
        t -= unit
    return dim


# --------------------------------------------------------------------------
# Tiled linear: out = act(x @ w + b)          (bf16 MXU, f32 accumulation)
# --------------------------------------------------------------------------

def _linear_kernel(x_ref, w_ref, b_ref, o_ref, acc_ref, *, activation):
    @pl.when(pl.program_id(2) == 0)
    def _():
        acc_ref[...] = jnp.zeros_like(acc_ref)

    acc_ref[...] += jnp.dot(x_ref[...], w_ref[...],
                            preferred_element_type=jnp.float32)

    @pl.when(pl.program_id(2) == pl.num_programs(2) - 1)
    def _():
        y = acc_ref[...] + b_ref[...]
        if activation == "relu":
            y = jnp.maximum(y, 0.0)
        o_ref[...] = y.astype(o_ref.dtype)


def linear(x2d, w, b, activation=None, out_dtype=None, tm=_TM, tn=_TN, tk=_TK):
    """x2d: (M, K), w: (K, N) bf16, b: (1, N) f32 -> (M, N) out_dtype."""
    M, K = x2d.shape
    Kw, N = w.shape
    assert K == Kw
    out_dtype = out_dtype or ACT_DT
    x2d = x2d.astype(jnp.bfloat16)
    w = w.astype(jnp.bfloat16)          # no-op for bf16 params

    tk = _pick_tile(K, tk, 128)         # divides K exactly -> never pad weights
    tn = _pick_tile(N, tn, 128)         # divides N exactly -> never pad weights/bias
    tm = min(tm, _round_up(M, 8))
    Mp = _round_up(M, tm)
    if Mp != M:                         # only (cheap) activation-row padding
        x2d = jnp.pad(x2d, ((0, Mp - M), (0, 0)))

    out = pl.pallas_call(
        functools.partial(_linear_kernel, activation=activation),
        out_shape=jax.ShapeDtypeStruct((Mp, N), out_dtype),
        grid=(Mp // tm, N // tn, K // tk),
        in_specs=[
            pl.BlockSpec((tm, tk), lambda i, j, k: (i, k)),
            pl.BlockSpec((tk, tn), lambda i, j, k: (k, j)),
            pl.BlockSpec((1, tn), lambda i, j, k: (0, j)),
        ],
        out_specs=pl.BlockSpec((tm, tn), lambda i, j, k: (i, j)),
        scratch_shapes=[pltpu.VMEM((tm, tn), jnp.float32)],
        compiler_params=pltpu.CompilerParams(
            dimension_semantics=("parallel", "parallel", "arbitrary")),
    )(x2d, w, b)

    return out[:M] if Mp != M else out


# --------------------------------------------------------------------------
# Fused linear + residual add + LayerNorm (output dim = full d_model in one tile)
# --------------------------------------------------------------------------

def _linear_res_ln_kernel(x_ref, w_ref, b_ref, r_ref, g_ref, bt_ref, o_ref,
                          acc_ref, *, eps):
    @pl.when(pl.program_id(1) == 0)
    def _():
        acc_ref[...] = jnp.zeros_like(acc_ref)

    acc_ref[...] += jnp.dot(x_ref[...], w_ref[...],
                            preferred_element_type=jnp.float32)

    @pl.when(pl.program_id(1) == pl.num_programs(1) - 1)
    def _():
        y = acc_ref[...] + b_ref[...] + r_ref[...].astype(jnp.float32)
        mean = jnp.mean(y, axis=-1, keepdims=True)
        var = jnp.mean((y - mean) ** 2, axis=-1, keepdims=True)
        inv = jax.lax.rsqrt(var + eps)
        o_ref[...] = ((y - mean) * inv * g_ref[...] + bt_ref[...]).astype(o_ref.dtype)


def _add_ln_kernel(x_ref, r_ref, g_ref, b_ref, o_ref, *, eps):
    x = x_ref[...].astype(jnp.float32) + r_ref[...].astype(jnp.float32)
    mean = jnp.mean(x, axis=-1, keepdims=True)
    var = jnp.mean((x - mean) ** 2, axis=-1, keepdims=True)
    o_ref[...] = ((x - mean) * jax.lax.rsqrt(var + eps) * g_ref[...]
                  + b_ref[...]).astype(o_ref.dtype)


def add_layernorm(x2d, r2d, gamma, beta, eps=1e-5, out_dtype=None, tm=256):
    """Fallback fused residual + LayerNorm (only used for very wide d_model)."""
    out_dtype = out_dtype or ACT_DT
    M, D = x2d.shape
    tm = min(tm, _round_up(M, 8))
    Mp = _round_up(M, tm)
    if Mp != M:
        x2d = jnp.pad(x2d, ((0, Mp - M), (0, 0)))
        r2d = jnp.pad(r2d, ((0, Mp - M), (0, 0)))
    out = pl.pallas_call(
        functools.partial(_add_ln_kernel, eps=eps),
        out_shape=jax.ShapeDtypeStruct((Mp, D), out_dtype),
        grid=(Mp // tm,),
        in_specs=[
            pl.BlockSpec((tm, D), lambda i: (i, 0)),
            pl.BlockSpec((tm, D), lambda i: (i, 0)),
            pl.BlockSpec((1, D), lambda i: (0, 0)),
            pl.BlockSpec((1, D), lambda i: (0, 0)),
        ],
        out_specs=pl.BlockSpec((tm, D), lambda i: (i, 0)),
        compiler_params=pltpu.CompilerParams(dimension_semantics=("parallel",)),
    )(x2d, r2d, gamma, beta)
    return out[:M] if Mp != M else out


def linear_res_ln(x2d, w, b, r2d, gamma, beta, eps=1e-5, out_dtype=None,
                  tm=_TM, tk=_TK):
    """LayerNorm(r + (x @ w + b)) fused into the matmul epilogue.  Requires the
    output width (d_model) to fit in a single N tile."""
    M, K = x2d.shape
    Kw, D = w.shape
    assert K == Kw
    out_dtype = out_dtype or ACT_DT
    if D > 2048:
        # TODO(synk): for very wide d_model, fall back to an un-fused path.
        y = linear(x2d, w, b, out_dtype=jnp.float32)
        return add_layernorm(y, r2d, gamma, beta, eps=eps, out_dtype=out_dtype)

    x2d = x2d.astype(jnp.bfloat16)
    r2d = r2d.astype(jnp.bfloat16)
    w = w.astype(jnp.bfloat16)
    if D > 1024:                       # keep VMEM modest (v5e 16 MiB scoped default)
        tm = min(tm, 256)
        tk = min(tk, 512)
    tk = _pick_tile(K, tk, 128)
    tm = min(tm, _round_up(M, 8))
    Mp = _round_up(M, tm)
    if Mp != M:
        x2d = jnp.pad(x2d, ((0, Mp - M), (0, 0)))
        r2d = jnp.pad(r2d, ((0, Mp - M), (0, 0)))

    out = pl.pallas_call(
        functools.partial(_linear_res_ln_kernel, eps=eps),
        out_shape=jax.ShapeDtypeStruct((Mp, D), out_dtype),
        grid=(Mp // tm, K // tk),
        in_specs=[
            pl.BlockSpec((tm, tk), lambda i, k: (i, k)),
            pl.BlockSpec((tk, D), lambda i, k: (k, 0)),
            pl.BlockSpec((1, D), lambda i, k: (0, 0)),
            pl.BlockSpec((tm, D), lambda i, k: (i, 0)),
            pl.BlockSpec((1, D), lambda i, k: (0, 0)),
            pl.BlockSpec((1, D), lambda i, k: (0, 0)),
        ],
        out_specs=pl.BlockSpec((tm, D), lambda i, k: (i, 0)),
        scratch_shapes=[pltpu.VMEM((tm, D), jnp.float32)],
        compiler_params=pltpu.CompilerParams(
            dimension_semantics=("parallel", "arbitrary")),
    )(x2d, w, b, r2d, gamma, beta)

    return out[:M] if Mp != M else out


# --------------------------------------------------------------------------
# Flash-style attention: grid=(B, head_groups, q_tiles, kv_tiles), online softmax
# --------------------------------------------------------------------------

def _pick_head_group(n_heads, d_k, d_v):
    """Smallest head-group that keeps q/k/v/out block widths (8,128)-legal and the
    output slab >= 128 lanes when possible."""
    valid = [g for g in range(1, n_heads + 1) if n_heads % g == 0
             and (g * d_k % 128 == 0 or g == n_heads)
             and (g * d_v % 128 == 0 or g == n_heads)]
    for g in valid:
        if g * d_v >= 128:
            return g
    return valid[0]


def _attention_kernel(q_ref, k_ref, v_ref, kmask_ref, o_ref,
                      m_sc, l_sc, acc_sc, *, n_hg, d_k, d_v, tq, tkv, causal):
    kvi = pl.program_id(3)

    @pl.when(kvi == 0)
    def _():
        m_sc[...] = jnp.full(m_sc.shape, -jnp.inf, m_sc.dtype)
        l_sc[...] = jnp.zeros_like(l_sc)
        acc_sc[...] = jnp.zeros_like(acc_sc)

    # Mask built in-kernel: key padding + (optional) causal, no (B,Sq,Sk) bias in HBM.
    kvalid = kmask_ref[0] > 0.5                                   # (1, tkv)
    allowed = jnp.broadcast_to(kvalid, (tq, tkv))
    if causal:
        q_ids = pl.program_id(2) * tq + jax.lax.broadcasted_iota(
            jnp.int32, (tq, tkv), 0)
        k_ids = kvi * tkv + jax.lax.broadcasted_iota(jnp.int32, (tq, tkv), 1)
        allowed = jnp.logical_and(allowed, q_ids >= k_ids)

    q_all = q_ref[0].astype(jnp.bfloat16)                         # (tq,  HG*dk)
    k_all = k_ref[0].astype(jnp.bfloat16)                         # (tkv, HG*dk)
    v_all = v_ref[0].astype(jnp.bfloat16)                         # (tkv, HG*dv)

    for h in range(n_hg):
        q = q_all[:, h * d_k:(h + 1) * d_k]                       # 1/sqrt(dk) folded in
        k = k_all[:, h * d_k:(h + 1) * d_k]
        v = v_all[:, h * d_v:(h + 1) * d_v]
        # bf16 MXU matmul, f32 accumulation.
        s = jnp.einsum('qd,kd->qk', q, k, preferred_element_type=jnp.float32)
        s = jnp.where(allowed, s, NEG)
        m_prev = m_sc[h]                                          # (tq, 1)
        m_new = jnp.maximum(m_prev, jnp.max(s, axis=-1, keepdims=True))
        alpha = jnp.exp(m_prev - m_new)
        p = jnp.exp(s - m_new)
        l_sc[h] = alpha * l_sc[h] + jnp.sum(p, axis=-1, keepdims=True)
        pv = jnp.dot(p.astype(jnp.bfloat16), v, preferred_element_type=jnp.float32)
        acc_sc[:, h * d_v:(h + 1) * d_v] = (
            alpha * acc_sc[:, h * d_v:(h + 1) * d_v] + pv)
        m_sc[h] = m_new

    @pl.when(kvi == pl.num_programs(3) - 1)
    def _():
        # Normalize the (tq, dv) output, not the (tq, tkv) scores.
        inv = jnp.concatenate(
            [jnp.broadcast_to(pl.reciprocal(l_sc[h], approx=True), (tq, d_v))
             for h in range(n_hg)], axis=-1)
        o_ref[0] = (acc_sc[...] * inv).astype(o_ref.dtype)


def attention(q_src, k_src, v_src, key_mask, *, n_heads, d_k, d_v,
              q_off=0, k_off=0, v_off=0, causal=False, out_dtype=None,
              tq_max=256, tkv_max=512):
    """q_src: (B,Sq,*), k_src/v_src: (B,Sk,*), key_mask: (B,1,Sk) float (1=keep).
    Q/K/V columns are selected straight out of (possibly fused) projection outputs
    via BlockSpec column offsets; falls back to a wrapper column slice when the
    offsets/widths are not 128-lane aligned (tiny test configs)."""
    out_dtype = out_dtype or ACT_DT
    B, Sq, _ = q_src.shape
    _, Sk, _ = k_src.shape
    HG = _pick_head_group(n_heads, d_k, d_v)
    NG = n_heads // HG
    wq, wv = HG * d_k, HG * d_v

    def prep(src, off, total_w, wblk):
        if wblk % 128 == 0 and off % wblk == 0:
            return src, off // wblk                         # zero-copy BlockSpec offset
        if off != 0 or src.shape[-1] != total_w:
            src = jax.lax.slice_in_dim(src, off, off + total_w, axis=2)
        return src, 0

    q_arr, qb = prep(q_src, q_off, n_heads * d_k, wq)
    k_arr, kb = prep(k_src, k_off, n_heads * d_k, wq)
    v_arr, vb = prep(v_src, v_off, n_heads * d_v, wv)

    tq = Sq if Sq <= tq_max else tq_max
    tkv = Sk if Sk <= tkv_max else tkv_max
    Sqp, Skp = _round_up(Sq, tq), _round_up(Sk, tkv)
    if Sqp != Sq:
        q_arr = jnp.pad(q_arr, ((0, 0), (0, Sqp - Sq), (0, 0)))
    if Skp != Sk:
        k_arr = jnp.pad(k_arr, ((0, 0), (0, Skp - Sk), (0, 0)))
        v_arr = jnp.pad(v_arr, ((0, 0), (0, Skp - Sk), (0, 0)))
        key_mask = jnp.pad(key_mask, ((0, 0), (0, 0), (0, Skp - Sk)))

    out = pl.pallas_call(
        functools.partial(_attention_kernel, n_hg=HG, d_k=d_k, d_v=d_v,
                          tq=tq, tkv=tkv, causal=causal),
        out_shape=jax.ShapeDtypeStruct((B, Sqp, n_heads * d_v), out_dtype),
        grid=(B, NG, Sqp // tq, Skp // tkv),
        in_specs=[
            pl.BlockSpec((1, tq, wq), lambda b, g, qi, ki: (b, qi, qb + g)),
            pl.BlockSpec((1, tkv, wq), lambda b, g, qi, ki: (b, ki, kb + g)),
            pl.BlockSpec((1, tkv, wv), lambda b, g, qi, ki: (b, ki, vb + g)),
            pl.BlockSpec((1, 1, tkv), lambda b, g, qi, ki: (b, 0, ki)),
        ],
        out_specs=pl.BlockSpec((1, tq, wv), lambda b, g, qi, ki: (b, qi, g)),
        scratch_shapes=[
            pltpu.VMEM((HG, tq, 1), jnp.float32),   # running max
            pltpu.VMEM((HG, tq, 1), jnp.float32),   # running sum
            pltpu.VMEM((tq, wv), jnp.float32),      # output accumulator
        ],
        compiler_params=pltpu.CompilerParams(
            dimension_semantics=("parallel", "parallel", "parallel", "arbitrary")),
    )(q_arr, k_arr, v_arr, key_mask)

    return out[:, :Sq, :] if Sqp != Sq else out


# --------------------------------------------------------------------------
# Model pieces (glue in plain JAX, compute in the Pallas kernels above)
# --------------------------------------------------------------------------

def encoder_layer(p, x, key_mask, cfg):
    B, S, D = x.shape
    H, dk, dv = cfg["n_heads"], cfg["d_k"], cfg["d_v"]
    x2 = x.reshape(B * S, D)

    qkv = linear(x2, p["attn"]["w_qkv"], p["attn"]["b_qkv"])
    qkv3 = qkv.reshape(B, S, -1)
    ctx = attention(qkv3, qkv3, qkv3, key_mask, n_heads=H, d_k=dk, d_v=dv,
                    q_off=0, k_off=H * dk, v_off=2 * H * dk, causal=False)
    x2 = linear_res_ln(ctx.reshape(B * S, H * dv), p["attn"]["w_o"],
                       p["attn"]["b_o"], x2, p["ln1_g"], p["ln1_b"])

    h = linear(x2, p["ff"]["w1"], p["ff"]["b1"], activation="relu")
    x2 = linear_res_ln(h, p["ff"]["w2"], p["ff"]["b2"], x2,
                       p["ln2_g"], p["ln2_b"])
    return x2.reshape(B, S, D)


def decoder_layer(p, x, enc_out, enc_key_mask, dec_key_mask, cfg):
    B, S, D = x.shape
    _, S_enc, _ = enc_out.shape
    H, dk, dv = cfg["n_heads"], cfg["d_k"], cfg["d_v"]
    x2 = x.reshape(B * S, D)

    # masked self-attention (causal + decoder padding)
    qkv = linear(x2, p["self_attn"]["w_qkv"], p["self_attn"]["b_qkv"])
    qkv3 = qkv.reshape(B, S, -1)
    ctx = attention(qkv3, qkv3, qkv3, dec_key_mask, n_heads=H, d_k=dk, d_v=dv,
                    q_off=0, k_off=H * dk, v_off=2 * H * dk, causal=True)
    x2 = linear_res_ln(ctx.reshape(B * S, H * dv), p["self_attn"]["w_o"],
                       p["self_attn"]["b_o"], x2, p["ln1_g"], p["ln1_b"])

    # cross-attention (encoder padding mask)
    q = linear(x2, p["cross_attn"]["w_q"], p["cross_attn"]["b_q"])
    kv = linear(enc_out.reshape(B * S_enc, D), p["cross_attn"]["w_kv"],
                p["cross_attn"]["b_kv"])
    q3 = q.reshape(B, S, H * dk)
    kv3 = kv.reshape(B, S_enc, -1)
    ctx = attention(q3, kv3, kv3, enc_key_mask, n_heads=H, d_k=dk, d_v=dv,
                    q_off=0, k_off=0, v_off=H * dk, causal=False)
    x2 = linear_res_ln(ctx.reshape(B * S, H * dv), p["cross_attn"]["w_o"],
                       p["cross_attn"]["b_o"], x2, p["ln2_g"], p["ln2_b"])

    # feed-forward
    h = linear(x2, p["ff"]["w1"], p["ff"]["b1"], activation="relu")
    x2 = linear_res_ln(h, p["ff"]["w2"], p["ff"]["b2"], x2,
                       p["ln3_g"], p["ln3_b"])
    return x2.reshape(B, S, D)


def sinusoidal_pos_enc(max_len, d_model):
    pos = jnp.arange(max_len, dtype=jnp.float32)[:, None]
    i = jnp.arange(d_model, dtype=jnp.float32)[None, :]
    angle = pos / jnp.power(10000.0, (2.0 * jnp.floor(i / 2.0)) / d_model)
    pe = jnp.where((jnp.arange(d_model) % 2) == 0, jnp.sin(angle), jnp.cos(angle))
    return pe  # (max_len, d_model)


def transformer_forward(params, inputs, outputs, cfg):
    D = cfg["d_model"]
    pad_idx = cfg["pad_idx"]
    B, S_in = inputs.shape
    _, S_out = outputs.shape
    pe = params["pos_enc"]

    # ---- embeddings (bf16 activations into the stacks) ----
    inp_embs = jnp.take(params["inp_emb"], inputs, axis=0) * math.sqrt(D) + pe[:S_in][None]
    out_embs = jnp.take(params["out_emb"], outputs, axis=0) + pe[:S_out][None]  # no sqrt (as reference)
    # dropout(p=0.1) is identity in eval mode
    enc = inp_embs.astype(ACT_DT)
    dec = out_embs.astype(ACT_DT)

    # ---- key padding masks (B, 1, S) floats; causal part built in-kernel ----
    inp_kmask = (inputs != pad_idx).astype(jnp.float32)[:, None, :]
    out_kmask = (outputs != pad_idx).astype(jnp.float32)[:, None, :]

    for lp in params["encoder"]:
        enc = encoder_layer(lp, enc, inp_kmask, cfg)
    for lp in params["decoder"]:
        dec = decoder_layer(lp, dec, enc, inp_kmask, out_kmask, cfg)

    # ---- tied output projection (pre-transposed, vocab-padded bf16 copy from init) ----
    logits = linear(dec.reshape(B * S_out, D), params["out_emb_T"],
                    params["fc_b"], out_dtype=jnp.float32)
    v_out = cfg["v_out"]
    return logits[:, :v_out].reshape(B, S_out, v_out)


# --------------------------------------------------------------------------
# Deterministic parameter initialization (weights bf16 for the MXU)
# --------------------------------------------------------------------------

def _init_linear(key, fan_in, fan_out, scale=1.0):
    k1, k2 = jax.random.split(key)
    lim = 1.0 / math.sqrt(fan_in)
    w = jax.random.uniform(k1, (fan_in, fan_out), jnp.float32, -lim, lim) * scale
    b = jax.random.uniform(k2, (1, fan_out), jnp.float32, -lim, lim) * scale
    return w.astype(jnp.bfloat16), b


def _init_mha_self(key, d_model, d_k, d_v, n_heads):
    ks = jax.random.split(key, 4)
    q_scale = 1.0 / math.sqrt(d_k)     # fold the softmax scale into the Q projection
    wq, bq = _init_linear(ks[0], d_model, n_heads * d_k, scale=q_scale)
    wk, bk = _init_linear(ks[1], d_model, n_heads * d_k)
    wv, bv = _init_linear(ks[2], d_model, n_heads * d_v)
    wo, bo = _init_linear(ks[3], n_heads * d_v, d_model)
    return dict(w_qkv=jnp.concatenate([wq, wk, wv], axis=1),
                b_qkv=jnp.concatenate([bq, bk, bv], axis=1),
                w_o=wo, b_o=bo)


def _init_mha_cross(key, d_model, d_k, d_v, n_heads):
    ks = jax.random.split(key, 4)
    q_scale = 1.0 / math.sqrt(d_k)
    wq, bq = _init_linear(ks[0], d_model, n_heads * d_k, scale=q_scale)
    wk, bk = _init_linear(ks[1], d_model, n_heads * d_k)
    wv, bv = _init_linear(ks[2], d_model, n_heads * d_v)
    wo, bo = _init_linear(ks[3], n_heads * d_v, d_model)
    return dict(w_q=wq, b_q=bq,
                w_kv=jnp.concatenate([wk, wv], axis=1),
                b_kv=jnp.concatenate([bk, bv], axis=1),
                w_o=wo, b_o=bo)


def _init_ff(key, d_model, d_ff):
    k1, k2 = jax.random.split(key)
    w1, b1 = _init_linear(k1, d_model, d_ff)
    w2, b2 = _init_linear(k2, d_ff, d_model)
    return dict(w1=w1, b1=b1, w2=w2, b2=b2)


def _ln(d_model):
    return jnp.ones((1, d_model), jnp.float32), jnp.zeros((1, d_model), jnp.float32)


def init_params(key, cfg):
    D, dk, dv, dff = cfg["d_model"], cfg["d_k"], cfg["d_v"], cfg["d_ff"]
    H, L = cfg["n_heads"], cfg["n_layers"]
    keys = jax.random.split(key, 2 + 2 * L)
    params = {}
    params["inp_emb"] = jax.random.normal(keys[0], (cfg["v_in"], D), jnp.float32)
    params["out_emb"] = jax.random.normal(keys[1], (cfg["v_out"], D), jnp.float32)

    # Tied output projection: transpose + pad the vocab axis ONCE at init
    # (weight tying: fc.weight = output_emb.weight), no per-forward pad/transpose.
    Vp = _round_up(cfg["v_out"], 128)
    if Vp > _TN:
        Vp = _round_up(cfg["v_out"], _TN)
    emb_pad = jnp.pad(params["out_emb"], ((0, Vp - cfg["v_out"]), (0, 0)))
    params["out_emb_T"] = emb_pad.T.astype(jnp.bfloat16)
    params["fc_b"] = jnp.zeros((1, Vp), jnp.float32)

    params["pos_enc"] = sinusoidal_pos_enc(cfg["max_seq_len"], D)

    enc_layers, dec_layers = [], []
    for l in range(L):
        ke = jax.random.split(keys[2 + l], 2)
        g1, b1 = _ln(D); g2, b2 = _ln(D)
        enc_layers.append(dict(attn=_init_mha_self(ke[0], D, dk, dv, H),
                               ff=_init_ff(ke[1], D, dff),
                               ln1_g=g1, ln1_b=b1, ln2_g=g2, ln2_b=b2))
        kd = jax.random.split(keys[2 + L + l], 3)
        g1, b1 = _ln(D); g2, b2 = _ln(D); g3, b3 = _ln(D)
        dec_layers.append(dict(self_attn=_init_mha_self(kd[0], D, dk, dv, H),
                               cross_attn=_init_mha_cross(kd[1], D, dk, dv, H),
                               ff=_init_ff(kd[2], D, dff),
                               ln1_g=g1, ln1_b=b1, ln2_g=g2, ln2_b=b2,
                               ln3_g=g3, ln3_b=b3))
    params["encoder"] = enc_layers
    params["decoder"] = dec_layers
    return params


# --------------------------------------------------------------------------

if __name__ == "__main__":
    cfg = dict(d_model=32, d_k=16, d_v=16, d_ff=64, n_layers=2, n_heads=2,
               max_seq_len=64, v_in=16, v_out=20, pad_idx=0)

    key = jax.random.PRNGKey(0)
    kp, ki, ko = jax.random.split(key, 3)
    params = init_params(kp, cfg)

    B, S_in, S_out = 2, 8, 8
    inputs = jax.random.randint(ki, (B, S_in), 2, cfg["v_in"], dtype=jnp.int32)
    outputs = jax.random.randint(ko, (B, S_out), 2, cfg["v_out"], dtype=jnp.int32)
    # introduce padding (pad_idx=0) to exercise the padding masks
    inputs = inputs.at[0, 6:].set(0)
    outputs = outputs.at[1, 5:].set(0)

    # TODO(synk): dropout(p=0.1) is treated as identity (eval mode); no RNG dropout in-kernel.
    # NOTE: softmax rows whose keys are fully masked become uniform (not zero) —
    # those are padded-query rows and are ignored downstream.
    logits = transformer_forward(params, inputs, outputs, cfg)
    logits = jax.block_until_ready(logits)

    assert logits.shape == (B, S_out, cfg["v_out"])
    assert bool(jnp.all(jnp.isfinite(logits)))
    print("KERNEL_OK")
</pallas_src>

<mosaic_0001>
module attributes {stable_mosaic.version = 11 : i64} {
  func.func @_linear_kernel(%arg0: i32, %arg1: i32, %arg2: i32, %arg3: memref<16x32xbf16, #tpu.memory_space<vmem>>, %arg4: memref<32x96xbf16, #tpu.memory_space<vmem>>, %arg5: memref<1x96xf32, #tpu.memory_space<vmem>>, %arg6: memref<16x96xbf16, #tpu.memory_space<vmem>>, %arg7: memref<16x96xf32, #tpu.memory_space<vmem>>) attributes {dimension_semantics = [#tpu.dimension_semantics<parallel>, #tpu.dimension_semantics<parallel>, #tpu.dimension_semantics<arbitrary>], iteration_bounds = array<i64: 1, 1, 1>, scalar_prefetch = 0 : i64, scratch_operands = 1 : i64, tpu.core_type = #tpu.core_type<tc>, window_params = [{transform_indices = @transform_0, window_bounds = array<i64: 16, 32>}, {transform_indices = @transform_1, window_bounds = array<i64: 32, 96>}, {transform_indices = @transform_2, window_bounds = array<i64: 1, 96>}, {transform_indices = @transform_3, window_bounds = array<i64: 16, 96>}]} {
    %c0_i32 = arith.constant 0 : i32
    %0 = arith.cmpi eq, %arg2, %c0_i32 : i32
    %1 = arith.extui %0 : i1 to i32
    %c0_i32_0 = arith.constant 0 : i32
    %2 = arith.cmpi ne, %1, %c0_i32_0 : i32
    scf.if %2 {
      %cst_10 = arith.constant 0.000000e+00 : f32
      %12 = vector.broadcast %cst_10 : f32 to vector<16x96xf32>
      %c0_11 = arith.constant 0 : index
      %c0_12 = arith.constant 0 : index
      %13 = vector.load %arg7[%c0_11, %c0_12] : memref<16x96xf32, #tpu.memory_space<vmem>>, vector<16x96xf32>
      tpu.vector_store %arg7[%c0_11, %c0_12], %12 {strides = array<i32>} : memref<16x96xf32, #tpu.memory_space<vmem>>, vector<16x96xf32>,
    } else {
    }
    %c0 = arith.constant 0 : index
    %c0_1 = arith.constant 0 : index
    %3 = vector.load %arg7[%c0, %c0_1] : memref<16x96xf32, #tpu.memory_space<vmem>>, vector<16x96xf32>
    %c0_2 = arith.constant 0 : index
    %c0_3 = arith.constant 0 : index
    %4 = vector.load %arg3[%c0_2, %c0_3] : memref<16x32xbf16, #tpu.memory_space<vmem>>, vector<16x32xbf16>
    %c0_4 = arith.constant 0 : index
    %c0_5 = arith.constant 0 : index
    %5 = vector.load %arg4[%c0_4, %c0_5] : memref<32x96xbf16, #tpu.memory_space<vmem>>, vector<32x96xbf16>
    %cst = arith.constant dense<0.000000e+00> : vector<16x96xf32>
    %6 = tpu.matmul %4, %5, %cst {dimension_numbers = #tpu.dot_dimension_numbers<[1], [0], [0], [1], [0, 0, 1, 1], [], []>} : vector<16x32xbf16>, vector<32x96xbf16>, vector<16x96xf32> -> vector<16x96xf32>
    %7 = arith.addf %3, %6 : vector<16x96xf32>
    %c0_6 = arith.constant 0 : index
    %c0_7 = arith.constant 0 : index
    %8 = vector.load %arg7[%c0_6, %c0_7] : memref<16x96xf32, #tpu.memory_space<vmem>>, vector<16x96xf32>
    tpu.vector_store %arg7[%c0_6, %c0_7], %7 {strides = array<i32>} : memref<16x96xf32, #tpu.memory_space<vmem>>, vector<16x96xf32>,
    %c0_i32_8 = arith.constant 0 : i32
    %9 = arith.cmpi eq, %arg2, %c0_i32_8 : i32
    %10 = arith.extui %9 : i1 to i32
    %c0_i32_9 = arith.constant 0 : i32
    %11 = arith.cmpi ne, %10, %c0_i32_9 : i32
    scf.if %11 {
      %c0_10 = arith.constant 0 : index
      %c0_11 = arith.constant 0 : index
      %12 = vector.load %arg7[%c0_10, %c0_11] : memref<16x96xf32, #tpu.memory_space<vmem>>, vector<16x96xf32>
      %c0_12 = arith.constant 0 : index
      %c0_13 = arith.constant 0 : index
      %13 = vector.load %arg5[%c0_12, %c0_13] : memref<1x96xf32, #tpu.memory_space<vmem>>, vector<1x96xf32>
      %14 = vector.broadcast %13 : vector<1x96xf32> to vector<16x96xf32>
      %15 = arith.addf %12, %14 : vector<16x96xf32>
      %16 = arith.truncf %15 : vector<16x96xf32> to vector<16x96xbf16>
      %c0_14 = arith.constant 0 : index
      %c0_15 = arith.constant 0 : index
      %17 = vector.load %arg6[%c0_14, %c0_15] : memref<16x96xbf16, #tpu.memory_space<vmem>>, vector<16x96xbf16>
      tpu.vector_store %arg6[%c0_14, %c0_15], %16 {strides = array<i32>} : memref<16x96xbf16, #tpu.memory_space<vmem>>, vector<16x96xbf16>,
    } else {
    }
    return
  }
  func.func @transform_0(%arg0: i32, %arg1: i32, %arg2: i32) -> (i32, i32) {
    %c0_i32 = arith.constant 0 : i32
    return %arg0, %arg2 : i32, i32
  }
  func.func @transform_1(%arg0: i32, %arg1: i32, %arg2: i32) -> (i32, i32) {
    %c0_i32 = arith.constant 0 : i32
    return %arg2, %arg1 : i32, i32
  }
  func.func @transform_2(%arg0: i32, %arg1: i32, %arg2: i32) -> (i32, i32) {
    %c0_i32 = arith.constant 0 : i32
    %c0_i32_0 = arith.constant 0 : i32
    return %c0_i32, %arg1 : i32, i32
  }
  func.func @transform_3(%arg0: i32, %arg1: i32, %arg2: i32) -> (i32, i32) {
    %c0_i32 = arith.constant 0 : i32
    return %arg0, %arg1 : i32, i32
  }
}

</mosaic_0001>

<llo_original>
// kernel: tpu_custom_call.1
$region0: #{tpu_custom_call.1}
  #allocation0 [shape = 'u32[]', space=smem, size = 0x4, offset = 0x4, fixed_abs, tag = 'smem constant byte address 0x4 - core index']
  #allocation1 [shape = 'u32[144,128]{1,0:T(1,128)}', space=vmem, size = 0x12000, scoped, tag = 'internal scratch']
  #allocation2 [shape = 'f32[16,96]{1,0:T(8,128)}', space=vmem, size = 0x2000, scoped, tag = 'scratch operand']
  %s0 = inlined_call_operand.hbm [shape: bf16[16,32], index: 0, kind: input, shape index: {}]
  %s1 = inlined_call_operand.hbm [shape: bf16[32,96], index: 1, kind: input, shape index: {}]
  %s2 = inlined_call_operand.vmem [shape: f32[1,96], index: 2, kind: input, shape index: {}]
  %s3 = inlined_call_operand.hbm [shape: bf16[16,96], index: 3, kind: output, shape index: {}]
  %s4 = sld [smem:[#allocation0]]
  $region38: #{tpu_custom_call.1} parent=0
    _
  %s6 = ssub.s32 1, %s4
  %s7 = scalar_select 0, %s6, %s4
  $region1: #{tpu_custom_call.1} parent=0
    #allocation3 [shape = 'u8[4096]{0}', space=vmem, size = 0x1000, scoped, tag = 'input window, operand 0, single buffered']
    #allocation4 [shape = 's32[1]{0}', space=sflag, size = 0x4, scoped, tag = 'scoped memory for tpu_custom_call.1']
    #allocation5 [shape = 's32[1]{0}', space=sflag, size = 0x4, scoped, tag = 'scoped memory for tpu_custom_call.1']
    #allocation6 [shape = 'u8[8192]{0}', space=vmem, size = 0x2000, scoped, tag = 'input window, operand 1, single buffered']
    #allocation7 [shape = 's32[1]{0}', space=sflag, size = 0x4, scoped, tag = 'scoped memory for tpu_custom_call.1']
    #allocation8 [shape = 'u8[4096]{0}', space=vmem, size = 0x1000, scoped, tag = 'output window, operand 0, single buffered']
    %8 = vsyncpa [#allocation4], 0
    %9 = vsyncpa [#allocation7], 0
    %10 = vsyncpa [#allocation5], 0
    // Predicated region
    $region2: #{tpu_custom_call.1} parent=1 // pred_check
      _
    $region3: #{tpu_custom_call.1} parent=1 // pred_check_branch
      %12 = sbr.rel (0) target = $region5
    $region4: #{tpu_custom_call.1} parent=1 // pred_region
      %s14 = ssub.s32 128, 128
      %15 = vsyncadd [#allocation4], %s14
      %s16 = sshll.u32 [#allocation3], 4
      %s17 = int_to_ptr.vmem [resolvable:$true] %s16
      %22 = dma.hbm_to_vmem [thread:$0]  %s0, 128, %s17, [#allocation4], 64, 64, 4
    $region5: #{tpu_custom_call.1} parent=1 // pred_fallthru
      _
    // Predicated region
    $region6: #{tpu_custom_call.1} parent=1 // pred_check
      _
    $region7: #{tpu_custom_call.1} parent=1 // pred_check_branch
      %24 = sbr.rel (0) target = $region9
    $region8: #{tpu_custom_call.1} parent=1 // pred_region
      %s26 = ssub.s32 256, 256
      %27 = vsyncadd [#allocation7], %s26
      %s28 = sshll.u32 [#allocation6], 4
      %s29 = int_to_ptr.vmem [resolvable:$true] %s28
      %34 = dma.hbm_to_vmem [thread:$0]  %s1, 256, %s29, [#allocation7], 64, 64, 4
    $region9: #{tpu_custom_call.1} parent=1 // pred_fallthru
      _
    // Predicated region
    $region10: #{tpu_custom_call.1} parent=1 // pred_check
      _
    $region11: #{tpu_custom_call.1} parent=1 // pred_check_branch
      %36 = sbr.rel (0) target = $region13
    $region12: #{tpu_custom_call.1} parent=1 // pred_region
      _
    $region13: #{tpu_custom_call.1} parent=1 // pred_fallthru
      _
    // Predicated region
    $region14: #{tpu_custom_call.1} parent=1 // pred_check
      _
    $region15: #{tpu_custom_call.1} parent=1 // pred_check_branch
      %38 = sbr.rel (0) target = $region17
    $region16: #{tpu_custom_call.1} parent=1 // pred_region
      %39 = dma.done [#allocation4], 128
    $region17: #{tpu_custom_call.1} parent=1 // pred_fallthru
      _
    // Predicated region
    $region18: #{tpu_custom_call.1} parent=1 // pred_check
      _
    $region19: #{tpu_custom_call.1} parent=1 // pred_check_branch
      %41 = sbr.rel (0) target = $region21
    $region20: #{tpu_custom_call.1} parent=1 // pred_region
      %42 = dma.done [#allocation7], 256
    $region21: #{tpu_custom_call.1} parent=1 // pred_fallthru
      _
    %p44 = scmp.eq.s32.totalorder 0, 0
    // Predicated region
    $region22: #{tpu_custom_call.1} parent=1 // pred_check
      %p45 = pneg %p44
    $region23: #{tpu_custom_call.1} parent=1 // pred_check_branch
      %47 = sbr.rel (%p45) target = $region25
    $region24: #{tpu_custom_call.1} parent=1 // pred_region
      %vm48 = vcmask 785408
      %49 = vst.msk [vmem:[#allocation2] sm:$0xff] %vm48, 0.0
      %50 = vst.msk [vmem:[#allocation2 + $0x8] sm:$0xff] %vm48, 0.0
    $region25: #{tpu_custom_call.1} parent=1 // pred_fallthru
      _
    %v51 = vld [vmem:[#allocation2] sm:$0xff]
    %v52 = vld [vmem:[#allocation2 + $0x8] sm:$0xff]
    %v53 = vld [vmem:[#allocation3] sm:$0xf]
    %v54 = vld [vmem:[#allocation3 + $0x4] sm:$0xf]
    %v55 = vld [vmem:[#allocation6] sm:$0xf]
    %v56 = vld [vmem:[#allocation6 + $0x4] sm:$0xf]
    %v57 = vld [vmem:[#allocation6 + $0x8] sm:$0xf]
    %v58 = vld [vmem:[#allocation6 + $0xc] sm:$0xf]
    %v61 = vunpack.c.l.b16 %v53
    %v62 = vunpack.c.l.b16 %v54
    %v63 = vpack.c.b16 %v62, %v61
    %v68 = vunpack.c.l.b16 %v55
    %v69 = vunpack.c.l.b16 %v56
    %v70 = vunpack.c.l.b16 %v57
    %v71 = vunpack.c.l.b16 %v58
    %v72 = vpack.c.b16 %v69, %v68
    %v73 = vpack.c.b16 %v71, %v70
    %vm76 = vcmask 261120
    %v78 = vsel %vm76, %v63, 0
    %80 = vmatprep.subr.bf16.mxu0 0
    %81 = vmatpush1.bf16.msra.mxu0 %v72
    %82 = vmatprep.subr.bf16.mxu0 0
    %83 = vmatpush1.bf16.msra.mxu0 %v73
    %84 = vmatprep.subr.bf16.mxu0 0
    %85 = vmatpush1.bf16.msra.mxu0 0
    %86 = vmatprep.subr.bf16.mxu0 0
    %87 = vmatpush1.bf16.msra.mxu0 0
    %88 = vmatprep.subr.bf16.mxu0 0
    %89 = vmatpush1.bf16.msra.mxu0 0
    %90 = vmatprep.subr.bf16.mxu0 0
    %91 = vmatpush1.bf16.msra.mxu0 0
    %92 = vmatprep.subr.bf16.mxu0 0
    %93 = vmatpush1.bf16.msra.mxu0 0
    %94 = vmatprep.subr.bf16.mxu0 0
    %95 = vmatpush1.bf16.msra.mxu0 0
    %96 = vmatprep.subr.bf16.mxu0 0
    %97 = vmatpush1.bf16.msra.mxu0 0
    %98 = vmatprep.subr.bf16.mxu0 0
    %99 = vmatpush1.bf16.msra.mxu0 0
    %100 = vmatprep.subr.bf16.mxu0 0
    %101 = vmatpush1.bf16.msra.mxu0 0
    %102 = vmatprep.subr.bf16.mxu0 0
    %103 = vmatpush1.bf16.msra.mxu0 0
    %104 = vmatprep.subr.bf16.mxu0 0
    %105 = vmatpush1.bf16.msra.mxu0 0
    %106 = vmatprep.subr.bf16.mxu0 0
    %107 = vmatpush1.bf16.msra.mxu0 0
    %108 = vmatprep.subr.bf16.mxu0 0
    %109 = vmatpush1.bf16.msra.mxu0 0
    %110 = vmatprep.subr.bf16.mxu0 0
    %111 = vmatpush1.bf16.msra.mxu0 0
    %112 = vmatprep.mubr.bf16.mxu0 0
    %113 = vmatmul.mubr.bf16.gmra.mrb[0].mxu0 %v78
    %v114 = vpop.f32.mrb[0].mxu0
    %v115 = vadd.f32 0.0, %v114
    %v116 = vpop.f32.mrb[0].mxu0
    %v117 = vpop.f32.mrb[0].mxu0
    %v118 = vadd.f32 0.0, %v117
    %v119 = vpop.f32.mrb[0].mxu0
    %120 = vdwg.mxu0
    %v121 = vadd.f32 %v51, %v115
    %v122 = vadd.f32 %v52, %v118
    %vm123 = vcmask 785408
    %124 = vst.msk [vmem:[#allocation2] sm:$0xff] %vm123, %v121
    %125 = vst.msk [vmem:[#allocation2 + $0x8] sm:$0xff] %vm123, %v122
    // Predicated region
    $region26: #{tpu_custom_call.1} parent=1 // pred_check
      %p126 = pneg %p44
    $region27: #{tpu_custom_call.1} parent=1 // pred_check_branch
      %128 = sbr.rel (%p126) target = $region29
    $region28: #{tpu_custom_call.1} parent=1 // pred_region
      %v129 = vld [vmem:[#allocation2] sm:$0xff]
      %v130 = vld [vmem:[#allocation2 + $0x8] sm:$0xff]
      %v131 = vld [vmem:[%s2] sm:$0x1]
      %v133 = vlaneseq
      %v134 = vshrl.u32 %v133, 7
      %v135 = vsub.s32 0, %v134
      %v136 = vrot.slane %v131, %v135
      %v138 = vadd.f32 %v129, %v136
      %v139 = vadd.f32 %v130, %v136
      %v140 = vpack.c.bf16 %v139, %v138
      %v142 = vunpack.c.l.b16 %v140
      %v143 = vunpack.c.h.b16 %v140
      %v144 = vpack.c.b16 %v142, %v142
      %v145 = vpack.c.b16 %v143, %v143
      %vm148 = vcmask 781312
      %149 = vst.msk [vmem:[#allocation8] sm:$0xf] %vm148, %v144
      %150 = vst.msk [vmem:[#allocation8 + $0x4] sm:$0xf] %vm148, %v145
    $region29: #{tpu_custom_call.1} parent=1 // pred_fallthru
      _
    // Predicated region
    $region30: #{tpu_custom_call.1} parent=1 // pred_check
      _
    $region31: #{tpu_custom_call.1} parent=1 // pred_check_branch
      %152 = sbr.rel (0) target = $region33
    $region32: #{tpu_custom_call.1} parent=1 // pred_region
      %s154 = ssub.s32 128, 128
      %155 = vsyncadd [#allocation5], %s154
      %s156 = sshll.u32 [#allocation8], 4
      %s157 = int_to_ptr.vmem [resolvable:$true] %s156
      %162 = dma.vmem_to_hbm [thread:$0]  %s157, 128, %s3, [#allocation5], 64, 64, 4
    $region33: #{tpu_custom_call.1} parent=1 // pred_fallthru
      _
    // Predicated region
    $region34: #{tpu_custom_call.1} parent=1 // pred_check
      _
    $region35: #{tpu_custom_call.1} parent=1 // pred_check_branch
      %164 = sbr.rel (0) target = $region37
    $region36: #{tpu_custom_call.1} parent=1 // pred_region
      %165 = dma.done [#allocation5], 128
    $region37: #{tpu_custom_call.1} parent=1 // pred_fallthru
      _
    %166 = vsyncpa [#allocation4], 1
    %167 = vsyncpa [#allocation7], 1
    %168 = vsyncpa [#allocation5], 1

</llo_original>
